<compile_context>
chip_gen: v7x
topology: tpu7x:2x2x1
jax: 0.10.0
libtpu: 0.0.40
codegen_flags: <defaults>
</compile_context>

<pallas_src>
import jax
import jax.numpy as jnp
from jax.experimental import pallas as pl
from jax.experimental.pallas import tpu as pltpu

NEG_SLOPE = 0.01   # nn.LeakyReLU default
BN_EPS = 1e-5      # nn.BatchNorm1d default
LANE = 128
SUBLANE = 8


def _round_up(n, m):
    return ((n + m - 1) // m) * m


def _submodel_kernel(x_ref, w1_ref, t1_ref, w2_ref, t2_ref, o_ref):
    """Fused 2-layer MLP block for one batch tile.

    Weights already carry the BatchNorm scale; t1/t2 are the folded bias+shift.
    Matmuls run in bf16 on the MXU with f32 accumulation; the affine add and
    LeakyReLU stay in f32 (v5e VPU has no bf16).
    """
    # Layer 1: Linear(+BN) -> LeakyReLU
    h = jnp.dot(x_ref[...], w1_ref[...], preferred_element_type=jnp.float32)
    h = h + t1_ref[...]
    h = jnp.where(h >= 0, h, NEG_SLOPE * h)

    # Layer 2: Linear(+BN) -> LeakyReLU
    y = jnp.dot(h.astype(w2_ref.dtype), w2_ref[...],
                preferred_element_type=jnp.float32)
    y = y + t2_ref[...]
    y = jnp.where(y >= 0, y, NEG_SLOPE * y)

    o_ref[...] = y.astype(o_ref.dtype)


def submodel_forward(x, params, *, batch_tile=None, compute_dtype=jnp.bfloat16):
    """x: (B, D_in) float32.  params: dict of weights / BN running stats."""
    B, d_in = x.shape
    w1, b1 = params["w1"], params["b1"]          # (D_in, H2), (H2,)
    w2, b2 = params["w2"], params["b2"]          # (H2, H),   (H,)
    h2 = w1.shape[1]
    h = w2.shape[1]

    # ---- Fold BatchNorm (running stats) + Linear bias into weights / shift ----
    inv1 = params["bn1_gamma"] / jnp.sqrt(params["bn1_var"] + BN_EPS)
    inv2 = params["bn2_gamma"] / jnp.sqrt(params["bn2_var"] + BN_EPS)
    t1 = ((b1 - params["bn1_mean"]) * inv1 + params["bn1_beta"]).astype(jnp.float32)
    t2 = ((b2 - params["bn2_mean"]) * inv2 + params["bn2_beta"]).astype(jnp.float32)
    w1f = (w1 * inv1[None, :]).astype(compute_dtype)
    w2f = (w2 * inv2[None, :]).astype(compute_dtype)

    # ---- Lane-dense padding: pad every feature dim to a multiple of 128 ----
    d_p = _round_up(d_in, LANE)
    h2_p = _round_up(h2, LANE)
    h_p = _round_up(h, LANE)
    w1f = jnp.pad(w1f, ((0, d_p - d_in), (0, h2_p - h2)))
    w2f = jnp.pad(w2f, ((0, h2_p - h2), (0, h_p - h)))
    t1 = jnp.pad(t1, ((0, h2_p - h2),)).reshape(1, h2_p)
    t2 = jnp.pad(t2, ((0, h_p - h),)).reshape(1, h_p)

    # ---- Batch tiling: big tiles, grid >= 2 when possible (v7x megacore) ----
    if batch_tile is None:
        if B >= 1024:
            batch_tile = 512
        elif B >= 256:
            batch_tile = 128
        else:
            batch_tile = _round_up(B, SUBLANE)
    batch_tile = _round_up(batch_tile, SUBLANE)
    b_p = _round_up(B, batch_tile)               # pad ragged batches

    x_p = x.astype(compute_dtype)
    if b_p != B or d_p != d_in:
        x_p = jnp.pad(x_p, ((0, b_p - B), (0, d_p - d_in)))

    grid = (b_p // batch_tile,)

    itemsize = jnp.dtype(compute_dtype).itemsize
    cost = pl.CostEstimate(
        flops=2 * b_p * (d_p * h2_p + h2_p * h_p),
        transcendentals=0,
        bytes_accessed=(b_p * d_p * itemsize            # x
                        + d_p * h2_p * itemsize         # w1
                        + h2_p * h_p * itemsize         # w2
                        + (h2_p + h_p) * 4              # t1, t2
                        + b_p * h_p * 4))               # output (f32)

    # TODO(synk): training-mode Dropout / batch-statistics BatchNorm are not
    # implemented (eval-mode semantics only).
    out = pl.pallas_call(
        _submodel_kernel,
        out_shape=jax.ShapeDtypeStruct((b_p, h_p), jnp.float32),
        grid_spec=pltpu.PrefetchScalarGridSpec(
            num_scalar_prefetch=0,
            grid=grid,
            in_specs=[
                # x: streamed over the batch axis
                pl.BlockSpec((batch_tile, d_p), lambda i: (i, 0)),
                # folded weights / shifts: constant index -> resident in VMEM
                pl.BlockSpec((d_p, h2_p), lambda i: (0, 0)),
                pl.BlockSpec((1, h2_p), lambda i: (0, 0)),
                pl.BlockSpec((h2_p, h_p), lambda i: (0, 0)),
                pl.BlockSpec((1, h_p), lambda i: (0, 0)),
            ],
            out_specs=pl.BlockSpec((batch_tile, h_p), lambda i: (i, 0)),
        ),
        compiler_params=pltpu.CompilerParams(
            dimension_semantics=("parallel",)),
        cost_estimate=cost,
    )(x_p, w1f, t1, w2f, t2)

    return out[:B, :h]


def _leaky(v):
    return jnp.where(v >= 0, v, NEG_SLOPE * v)


def _reference_forward_f32(x, params):
    """Pure-JAX f32 reference (eval-mode PyTorch semantics)."""
    h = x @ params["w1"] + params["b1"]
    h = (h - params["bn1_mean"]) / jnp.sqrt(params["bn1_var"] + BN_EPS)
    h = _leaky(h * params["bn1_gamma"] + params["bn1_beta"])
    y = h @ params["w2"] + params["b2"]
    y = (y - params["bn2_mean"]) / jnp.sqrt(params["bn2_var"] + BN_EPS)
    y = _leaky(y * params["bn2_gamma"] + params["bn2_beta"])
    return y


def _reference_forward_quantized(x, params, compute_dtype=jnp.bfloat16):
    """Reference with the same bf16 quantization / f32 accumulation as the kernel."""
    inv1 = params["bn1_gamma"] / jnp.sqrt(params["bn1_var"] + BN_EPS)
    inv2 = params["bn2_gamma"] / jnp.sqrt(params["bn2_var"] + BN_EPS)
    t1 = (params["b1"] - params["bn1_mean"]) * inv1 + params["bn1_beta"]
    t2 = (params["b2"] - params["bn2_mean"]) * inv2 + params["bn2_beta"]
    w1f = (params["w1"] * inv1[None, :]).astype(compute_dtype)
    w2f = (params["w2"] * inv2[None, :]).astype(compute_dtype)
    h = jnp.dot(x.astype(compute_dtype), w1f, preferred_element_type=jnp.float32) + t1
    h = _leaky(h)
    y = jnp.dot(h.astype(compute_dtype), w2f, preferred_element_type=jnp.float32) + t2
    return _leaky(y)


def make_params(key, d_in, hidden):
    h2 = hidden // 2
    ks = jax.random.split(key, 8)
    lim1 = 1.0 / jnp.sqrt(d_in)
    lim2 = 1.0 / jnp.sqrt(h2)
    return {
        "w1": jax.random.uniform(ks[0], (d_in, h2), jnp.float32, -lim1, lim1),
        "b1": jax.random.uniform(ks[1], (h2,), jnp.float32, -lim1, lim1),
        "bn1_gamma": 1.0 + 0.1 * jax.random.normal(ks[2], (h2,), jnp.float32),
        "bn1_beta": 0.1 * jax.random.normal(ks[3], (h2,), jnp.float32),
        "bn1_mean": 0.05 * jax.random.normal(ks[4], (h2,), jnp.float32),
        "bn1_var": jnp.ones((h2,), jnp.float32)
                   + 0.1 * jax.random.uniform(ks[5], (h2,), jnp.float32),
        "w2": jax.random.uniform(ks[6], (h2, hidden), jnp.float32, -lim2, lim2),
        "b2": jax.random.uniform(ks[7], (hidden,), jnp.float32, -lim2, lim2),
        "bn2_gamma": jnp.ones((hidden,), jnp.float32),
        "bn2_beta": jnp.zeros((hidden,), jnp.float32),
        "bn2_mean": jnp.zeros((hidden,), jnp.float32),
        "bn2_var": jnp.ones((hidden,), jnp.float32),
    }


if __name__ == "__main__":
    key = jax.random.PRNGKey(0)
    k_x, k_p = jax.random.split(key)

    B, D_IN, HIDDEN = 256, 128, 64          # input_size=128, hidden_size=64
    x = jax.random.normal(k_x, (B, D_IN), jnp.float32)
    params = make_params(k_p, D_IN, HIDDEN)

    out = submodel_forward(x, params)       # auto batch_tile=128 -> grid=(2,)
    out = jax.block_until_ready(out)
    assert out.shape == (B, HIDDEN)

    # Tight check against a reference with identical bf16 quantization.
    ref_q = _reference_forward_quantized(x, params)
    assert jnp.max(jnp.abs(out - ref_q)) < 2e-3

    # Loose sanity check against the full-f32 reference (bf16 weight quantization
    # error only -- precision trade-off from bf16 MXU inputs, not a bug).
    ref_f32 = _reference_forward_f32(x, params)
    assert jnp.max(jnp.abs(out - ref_f32)) < 1e-1

    print("KERNEL_OK")
</pallas_src>

<mosaic_0001>
module attributes {stable_mosaic.version = 11 : i64} {
  func.func @_submodel_kernel(%arg0: i32, %arg1: memref<128x128xbf16, #tpu.memory_space<vmem>>, %arg2: memref<128x128xbf16, #tpu.memory_space<vmem>>, %arg3: memref<1x128xf32, #tpu.memory_space<vmem>>, %arg4: memref<128x128xbf16, #tpu.memory_space<vmem>>, %arg5: memref<1x128xf32, #tpu.memory_space<vmem>>, %arg6: memref<128x128xf32, #tpu.memory_space<vmem>>) attributes {dimension_semantics = [#tpu.dimension_semantics<parallel>], iteration_bounds = array<i64: 2>, scalar_prefetch = 0 : i64, scratch_operands = 0 : i64, tpu.core_type = #tpu.core_type<tc>, window_params = [{transform_indices = @transform_0, window_bounds = array<i64: 128, 128>}, {pipeline_mode = #tpu.pipeline_mode<synchronous>, transform_indices = @transform_1, window_bounds = array<i64: 128, 128>}, {pipeline_mode = #tpu.pipeline_mode<synchronous>, transform_indices = @transform_2, window_bounds = array<i64: 1, 128>}, {pipeline_mode = #tpu.pipeline_mode<synchronous>, transform_indices = @transform_3, window_bounds = array<i64: 128, 128>}, {pipeline_mode = #tpu.pipeline_mode<synchronous>, transform_indices = @transform_4, window_bounds = array<i64: 1, 128>}, {transform_indices = @transform_5, window_bounds = array<i64: 128, 128>}]} {
    %c0 = arith.constant 0 : index
    %c0_0 = arith.constant 0 : index
    %0 = vector.load %arg1[%c0, %c0_0] : memref<128x128xbf16, #tpu.memory_space<vmem>>, vector<128x128xbf16>
    %c0_1 = arith.constant 0 : index
    %c0_2 = arith.constant 0 : index
    %1 = vector.load %arg2[%c0_1, %c0_2] : memref<128x128xbf16, #tpu.memory_space<vmem>>, vector<128x128xbf16>
    %cst = arith.constant dense<0.000000e+00> : vector<128x128xf32>
    %2 = tpu.matmul %0, %1, %cst {dimension_numbers = #tpu.dot_dimension_numbers<[1], [0], [0], [1], [0, 0, 1, 1], [], []>} : vector<128x128xbf16>, vector<128x128xbf16>, vector<128x128xf32> -> vector<128x128xf32>
    %c0_3 = arith.constant 0 : index
    %c0_4 = arith.constant 0 : index
    %3 = vector.load %arg3[%c0_3, %c0_4] : memref<1x128xf32, #tpu.memory_space<vmem>>, vector<1x128xf32>
    %4 = vector.broadcast %3 : vector<1x128xf32> to vector<128x128xf32>
    %5 = arith.addf %2, %4 : vector<128x128xf32>
    %cst_5 = arith.constant 0.000000e+00 : f32
    %6 = vector.broadcast %cst_5 : f32 to vector<128x128xf32>
    %7 = arith.cmpf oge, %5, %6 : vector<128x128xf32>
    %cst_6 = arith.constant 0.00999999977 : f32
    %8 = vector.broadcast %cst_6 : f32 to vector<128x128xf32>
    %9 = arith.mulf %8, %5 : vector<128x128xf32>
    %10 = arith.select %7, %5, %9 : vector<128x128xi1>, vector<128x128xf32>
    %11 = arith.truncf %10 : vector<128x128xf32> to vector<128x128xbf16>
    %c0_7 = arith.constant 0 : index
    %c0_8 = arith.constant 0 : index
    %12 = vector.load %arg4[%c0_7, %c0_8] : memref<128x128xbf16, #tpu.memory_space<vmem>>, vector<128x128xbf16>
    %cst_9 = arith.constant dense<0.000000e+00> : vector<128x128xf32>
    %13 = tpu.matmul %11, %12, %cst_9 {dimension_numbers = #tpu.dot_dimension_numbers<[1], [0], [0], [1], [0, 0, 1, 1], [], []>} : vector<128x128xbf16>, vector<128x128xbf16>, vector<128x128xf32> -> vector<128x128xf32>
    %c0_10 = arith.constant 0 : index
    %c0_11 = arith.constant 0 : index
    %14 = vector.load %arg5[%c0_10, %c0_11] : memref<1x128xf32, #tpu.memory_space<vmem>>, vector<1x128xf32>
    %15 = vector.broadcast %14 : vector<1x128xf32> to vector<128x128xf32>
    %16 = arith.addf %13, %15 : vector<128x128xf32>
    %cst_12 = arith.constant 0.000000e+00 : f32
    %17 = vector.broadcast %cst_12 : f32 to vector<128x128xf32>
    %18 = arith.cmpf oge, %16, %17 : vector<128x128xf32>
    %cst_13 = arith.constant 0.00999999977 : f32
    %19 = vector.broadcast %cst_13 : f32 to vector<128x128xf32>
    %20 = arith.mulf %19, %16 : vector<128x128xf32>
    %21 = arith.select %18, %16, %20 : vector<128x128xi1>, vector<128x128xf32>
    %c0_14 = arith.constant 0 : index
    %c0_15 = arith.constant 0 : index
    %22 = vector.load %arg6[%c0_14, %c0_15] : memref<128x128xf32, #tpu.memory_space<vmem>>, vector<128x128xf32>
    tpu.vector_store %arg6[%c0_14, %c0_15], %21 {strides = array<i32>} : memref<128x128xf32, #tpu.memory_space<vmem>>, vector<128x128xf32>,
    return
  }
  func.func @transform_0(%arg0: i32) -> (i32, i32) {
    %c0_i32 = arith.constant 0 : i32
    %c0_i32_0 = arith.constant 0 : i32
    return %arg0, %c0_i32 : i32, i32
  }
  func.func @transform_1(%arg0: i32) -> (i32, i32) {
    %c0_i32 = arith.constant 0 : i32
    %c0_i32_0 = arith.constant 0 : i32
    %c0_i32_1 = arith.constant 0 : i32
    return %c0_i32, %c0_i32_0 : i32, i32
  }
  func.func @transform_2(%arg0: i32) -> (i32, i32) {
    %c0_i32 = arith.constant 0 : i32
    %c0_i32_0 = arith.constant 0 : i32
    %c0_i32_1 = arith.constant 0 : i32
    return %c0_i32, %c0_i32_0 : i32, i32
  }
  func.func @transform_3(%arg0: i32) -> (i32, i32) {
    %c0_i32 = arith.constant 0 : i32
    %c0_i32_0 = arith.constant 0 : i32
    %c0_i32_1 = arith.constant 0 : i32
    return %c0_i32, %c0_i32_0 : i32, i32
  }
  func.func @transform_4(%arg0: i32) -> (i32, i32) {
    %c0_i32 = arith.constant 0 : i32
    %c0_i32_0 = arith.constant 0 : i32
    %c0_i32_1 = arith.constant 0 : i32
    return %c0_i32, %c0_i32_0 : i32, i32
  }
  func.func @transform_5(%arg0: i32) -> (i32, i32) {
    %c0_i32 = arith.constant 0 : i32
    %c0_i32_0 = arith.constant 0 : i32
    return %arg0, %c0_i32 : i32, i32
  }
}

</mosaic_0001>

<llo_original>
// kernel: tpu_custom_call.1
$region0: #{tpu_custom_call.1}
  #allocation0 [shape = 'u32[]', space=smem, size = 0x4, offset = 0x4, fixed_abs, tag = 'smem constant byte address 0x4 - core index']
  #allocation1 [shape = 'u32[144,128]{1,0:T(1,128)}', space=vmem, size = 0x12000, scoped, tag = 'internal scratch']
  %s0 = inlined_call_operand.hbm [shape: bf16[256,128], index: 0, kind: input, shape index: {}]
  %s1 = inlined_call_operand.hbm [shape: bf16[128,128], index: 1, kind: input, shape index: {}]
  %s2 = inlined_call_operand.vmem [shape: f32[1,128], index: 2, kind: input, shape index: {}]
  %s3 = inlined_call_operand.hbm [shape: bf16[128,128], index: 3, kind: input, shape index: {}]
  %s4 = inlined_call_operand.vmem [shape: f32[1,128], index: 4, kind: input, shape index: {}]
  %s5 = inlined_call_operand.hbm [shape: f32[256,128], index: 5, kind: output, shape index: {}]
  %s6 = sld [smem:[#allocation0]]
  $region65: #{tpu_custom_call.1} parent=0
    _
  %s8 = ssub.s32 1, %s6
  %s9 = scalar_select 0, %s8, %s6
  $region1: #{tpu_custom_call.1} parent=0
    #allocation2 [shape = 'u8[65536]{0}', space=vmem, size = 0x10000, scoped, tag = 'input window, operand 0']
    #allocation3 [shape = 's32[2]{0}', space=sflag, size = 0x8, scoped, tag = 'scoped memory for tpu_custom_call.1']
    #allocation4 [shape = 's32[2]{0}', space=sflag, size = 0x8, scoped, tag = 'scoped memory for tpu_custom_call.1']
    #allocation5 [shape = 'u8[32768]{0}', space=vmem, size = 0x8000, scoped, tag = 'input window, operand 1, single buffered']
    #allocation6 [shape = 's32[1]{0}', space=sflag, size = 0x4, scoped, tag = 'scoped memory for tpu_custom_call.1']
    #allocation7 [shape = 'u8[32768]{0}', space=vmem, size = 0x8000, scoped, tag = 'input window, operand 3, single buffered']
    #allocation8 [shape = 'u8[131072]{0}', space=vmem, size = 0x20000, scoped, tag = 'output window, operand 0']
    %10 = vsyncpa [#allocation3], 0
    %s11 = scalar_lea.sflag [#allocation3], 1
    %12 = vsyncpa %s11, 0
    %13 = vsyncpa [#allocation6], 0
    %14 = vsyncpa [#allocation4], 0
    %s15 = scalar_lea.sflag [#allocation4], 1
    %16 = vsyncpa %s15, 0
    loop: start=0, step=1, limit=4
    $region2: #{tpu_custom_call.1} parent=1 // loop_pre_header
      _
    $region3: #{tpu_custom_call.1} parent=1 // loop_header
      %s18 = sphi 0, %s22
      %p19 = scmp.ge.s32.totalorder %s18, 4
      %s28 = sphi 0, %s30
      %s31 = sphi 0, %s28
      %s32 = sphi 0, %s31
      %s48 = sphi 0, %s32
      %s52 = sphi 0, %s52
      %s54 = sphi 0, %s52
      %s55 = sphi 0, %s54
      %s69 = sphi 0, %s55
      %s73 = sphi 0, %s73
      %s75 = sphi 0, %s73
      %s76 = sphi 0, %s75
      %s90 = sphi 0, %s76
      %s94 = sphi 0, %s94
      %s96 = sphi 0, %s94
      %s97 = sphi 0, %s96
      %s111 = sphi 0, %s97
      %s115 = sphi 0, %s115
      %s117 = sphi 0, %s115
      %s118 = sphi 0, %s117
      %s132 = sphi 0, %s118
      %s138 = sphi 0, %s140
      %s141 = sphi 0, %s138
      %s142 = sphi 0, %s141
      %s158 = sphi 0, %s142
    $region4: #{tpu_custom_call.1} parent=1 // loop_header_branch
      %21 = sbr.rel (%p19) target = $region8
    $region5: #{tpu_custom_call.1} parent=1 // loop_body
      %s23 = ssub.s32 %s18, 1
      %s24 = ssub.s32 %s18, 2
      %s25 = sadd.s32 %s18, 1
      %s26 = ssub.s32 %s18, %s25
      %p27 = scmp.eq.s32.totalorder %s26, 0
      %s29 = sadd.s32 %s28, 1
      %s30 = scalar_select %p27, %s28, %s29
      %p33 = pneg %p27
      %p34 = scmp.eq.s32.totalorder %s18, 1
      %p35 = por %p33, %p34
      %p36 = scmp.ne.s32.totalorder %s28, %s31
      %p37 = scmp.eq.s32.totalorder %s18, 0
      %p38 = por %p36, %p37
      %p39 = scmp.ne.s32.totalorder %s28, %s31
      %p40 = scmp.eq.s32.totalorder %s23, 1
      %p41 = por %p39, %p40
      %p42 = scmp.ne.s32.totalorder %s31, %s32
      %p43 = scmp.eq.s32.totalorder %s23, 0
      %p44 = por %p42, %p43
      %p45 = scmp.ne.s32.totalorder %s31, %s32
      %p46 = scmp.eq.s32.totalorder %s24, 1
      %p47 = por %p45, %p46
      %p49 = scmp.ne.s32.totalorder %s32, %s48
      %p50 = scmp.eq.s32.totalorder %s24, 0
      %p51 = por %p49, %p50
      %s53 = sadd.s32 %s52, 1
      %p56 = scmp.eq.s32.totalorder %s18, 1
      %p57 = scmp.ne.s32.totalorder %s52, %s54
      %p58 = scmp.eq.s32.totalorder %s18, 0
      %p59 = por %p57, %p58
      %p60 = scmp.ne.s32.totalorder %s52, %s54
      %p61 = scmp.eq.s32.totalorder %s23, 1
      %p62 = por %p60, %p61
      %p63 = scmp.ne.s32.totalorder %s54, %s55
      %p64 = scmp.eq.s32.totalorder %s23, 0
      %p65 = por %p63, %p64
      %p66 = scmp.ne.s32.totalorder %s54, %s55
      %p67 = scmp.eq.s32.totalorder %s24, 1
      %p68 = por %p66, %p67
      %p70 = scmp.ne.s32.totalorder %s55, %s69
      %p71 = scmp.eq.s32.totalorder %s24, 0
      %p72 = por %p70, %p71
      %s74 = sadd.s32 %s73, 1
      %p77 = scmp.eq.s32.totalorder %s18, 1
      %p78 = scmp.ne.s32.totalorder %s73, %s75
      %p79 = scmp.eq.s32.totalorder %s18, 0
      %p80 = por %p78, %p79
      %p81 = scmp.ne.s32.totalorder %s73, %s75
      %p82 = scmp.eq.s32.totalorder %s23, 1
      %p83 = por %p81, %p82
      %p84 = scmp.ne.s32.totalorder %s75, %s76
      %p85 = scmp.eq.s32.totalorder %s23, 0
      %p86 = por %p84, %p85
      %p87 = scmp.ne.s32.totalorder %s75, %s76
      %p88 = scmp.eq.s32.totalorder %s24, 1
      %p89 = por %p87, %p88
      %p91 = scmp.ne.s32.totalorder %s76, %s90
      %p92 = scmp.eq.s32.totalorder %s24, 0
      %p93 = por %p91, %p92
      %s95 = sadd.s32 %s94, 1
      %p98 = scmp.eq.s32.totalorder %s18, 1
      %p99 = scmp.ne.s32.totalorder %s94, %s96
      %p100 = scmp.eq.s32.totalorder %s18, 0
      %p101 = por %p99, %p100
      %p102 = scmp.ne.s32.totalorder %s94, %s96
      %p103 = scmp.eq.s32.totalorder %s23, 1
      %p104 = por %p102, %p103
      %p105 = scmp.ne.s32.totalorder %s96, %s97
      %p106 = scmp.eq.s32.totalorder %s23, 0
      %p107 = por %p105, %p106
      %p108 = scmp.ne.s32.totalorder %s96, %s97
      %p109 = scmp.eq.s32.totalorder %s24, 1
      %p110 = por %p108, %p109
      %p112 = scmp.ne.s32.totalorder %s97, %s111
      %p113 = scmp.eq.s32.totalorder %s24, 0
      %p114 = por %p112, %p113
      %s116 = sadd.s32 %s115, 1
      %p119 = scmp.eq.s32.totalorder %s18, 1
      %p120 = scmp.ne.s32.totalorder %s115, %s117
      %p121 = scmp.eq.s32.totalorder %s18, 0
      %p122 = por %p120, %p121
      %p123 = scmp.ne.s32.totalorder %s115, %s117
      %p124 = scmp.eq.s32.totalorder %s23, 1
      %p125 = por %p123, %p124
      %p126 = scmp.ne.s32.totalorder %s117, %s118
      %p127 = scmp.eq.s32.totalorder %s23, 0
      %p128 = por %p126, %p127
      %p129 = scmp.ne.s32.totalorder %s117, %s118
      %p130 = scmp.eq.s32.totalorder %s24, 1
      %p131 = por %p129, %p130
      %p133 = scmp.ne.s32.totalorder %s118, %s132
      %p134 = scmp.eq.s32.totalorder %s24, 0
      %p135 = por %p133, %p134
      %s136 = ssub.s32 %s18, %s25
      %p137 = scmp.eq.s32.totalorder %s136, 0
      %s139 = sadd.s32 %s138, 1
      %s140 = scalar_select %p137, %s138, %s139
      %p143 = pneg %p137
      %p144 = scmp.eq.s32.totalorder %s18, 1
      %p145 = por %p143, %p144
      %p146 = scmp.ne.s32.totalorder %s138, %s141
      %p147 = scmp.eq.s32.totalorder %s18, 0
      %p148 = por %p146, %p147
      %p149 = scmp.ne.s32.totalorder %s138, %s141
      %p150 = scmp.eq.s32.totalorder %s23, 1
      %p151 = por %p149, %p150
      %p152 = scmp.ne.s32.totalorder %s141, %s142
      %p153 = scmp.eq.s32.totalorder %s23, 0
      %p154 = por %p152, %p153
      %p155 = scmp.ne.s32.totalorder %s141, %s142
      %p156 = scmp.eq.s32.totalorder %s24, 1
      %p157 = por %p155, %p156
      %p159 = scmp.ne.s32.totalorder %s142, %s158
      %p160 = scmp.eq.s32.totalorder %s24, 0
      %p161 = por %p159, %p160
      %p162 = scmp.le.s32.totalorder 1, %s18
      %p163 = scmp.lt.s32.totalorder %s18, 3
      %p164 = pnand %p162, %p163
      %p165 = pneg %p164
      // Predicated region
      $region9: #{tpu_custom_call.1} parent=5 // pred_check
        _
      $region10: #{tpu_custom_call.1} parent=5 // pred_check_branch
        %167 = sbr.rel (%p164) target = $region12
      $region11: #{tpu_custom_call.1} parent=5 // pred_region
        %s168 = ssub.s32 %s18, 1
        // Predicated region
        $region13: #{tpu_custom_call.1} parent=11 // pred_check
          %p169 = pneg %p65
        $region14: #{tpu_custom_call.1} parent=11 // pred_check_branch
          %171 = sbr.rel (%p169) target = $region16
        $region15: #{tpu_custom_call.1} parent=11 // pred_region
          %s173 = ssub.s32 1024, 1024
          %174 = vsyncadd [#allocation6], %s173
          %s175 = sshll.u32 [#allocation5], 4
          %s176 = int_to_ptr.vmem [resolvable:$true] %s175
          %181 = dma.hbm_to_vmem [thread:$0]  %s1, 1024, %s176, [#allocation6], 64, 64, 4
        $region16: #{tpu_custom_call.1} parent=11 // pred_fallthru
          _
        // Predicated region
        $region17: #{tpu_custom_call.1} parent=11 // pred_check
          %p182 = pneg %p86
        $region18: #{tpu_custom_call.1} parent=11 // pred_check_branch
          %184 = sbr.rel (%p182) target = $region20
        $region19: #{tpu_custom_call.1} parent=11 // pred_region
          _
        $region20: #{tpu_custom_call.1} parent=11 // pred_fallthru
          _
        // Predicated region
        $region21: #{tpu_custom_call.1} parent=11 // pred_check
          %p185 = pneg %p107
        $region22: #{tpu_custom_call.1} parent=11 // pred_check_branch
          %187 = sbr.rel (%p185) target = $region24
        $region23: #{tpu_custom_call.1} parent=11 // pred_region
          %s189 = ssub.s32 1024, 1024
          %190 = vsyncadd [#allocation6], %s189
          %s191 = sshll.u32 [#allocation7], 4
          %s192 = int_to_ptr.vmem [resolvable:$true] %s191
          %197 = dma.hbm_to_vmem [thread:$0]  %s3, 1024, %s192, [#allocation6], 64, 64, 4
        $region24: #{tpu_custom_call.1} parent=11 // pred_fallthru
          _
        // Predicated region
        $region25: #{tpu_custom_call.1} parent=11 // pred_check
          %p198 = pneg %p128
        $region26: #{tpu_custom_call.1} parent=11 // pred_check_branch
          %200 = sbr.rel (%p198) target = $region28
        $region27: #{tpu_custom_call.1} parent=11 // pred_region
          _
        $region28: #{tpu_custom_call.1} parent=11 // pred_fallthru
          _
      $region12: #{tpu_custom_call.1} parent=5 // pred_fallthru
        _
      %p201 = scmp.lt.s32.totalorder %s18, 2
      // Predicated region
      $region29: #{tpu_custom_call.1} parent=5 // pred_check
        %p202 = pneg %p201
      $region30: #{tpu_custom_call.1} parent=5 // pred_check_branch
        %204 = sbr.rel (%p202) target = $region32
      $region31: #{tpu_custom_call.1} parent=5 // pred_region
        // Predicated region
        $region33: #{tpu_custom_call.1} parent=31 // pred_check
          %p205 = pneg %p38
        $region34: #{tpu_custom_call.1} parent=31 // pred_check_branch
          %207 = sbr.rel (%p205) target = $region36
        $region35: #{tpu_custom_call.1} parent=31 // pred_region
          %s208 = sand.u32 %s28, 1
          %s209 = scalar_lea.sflag [#allocation3], %s208
          %s210 = sand.u32 %s28, 1
          %s211 = smul.addr %s210, 64
          %s212 = scalar_lea.vmem [#allocation2], %s211
          %s213 = smul.u32 16, %s18
          %s215 = ssub.s32 1024, 1024
          %216 = vsyncadd %s209, %s215
          %s217 = smul.addr %s213, 64
          %s218 = scalar_lea.hbm %s0, %s217
          %s219 = sshll.u32 %s212, 4
          %s220 = int_to_ptr.vmem [resolvable:$true] %s219
          %225 = dma.hbm_to_vmem [thread:$0]  %s218, 1024, %s220, %s209, 64, 64, 4
        $region36: #{tpu_custom_call.1} parent=31 // pred_fallthru
          _
      $region32: #{tpu_custom_call.1} parent=5 // pred_fallthru
        _
      %p226 = scmp.le.s32.totalorder 1, %s18
      %p227 = scmp.lt.s32.totalorder %s18, 3
      %p228 = pnand %p226, %p227
      %p229 = pneg %p228
      // Predicated region
      $region37: #{tpu_custom_call.1} parent=5 // pred_check
        _
      $region38: #{tpu_custom_call.1} parent=5 // pred_check_branch
        %231 = sbr.rel (%p228) target = $region40
      $region39: #{tpu_custom_call.1} parent=5 // pred_region
        %s232 = ssub.s32 %s18, 1
        %s233 = sand.u32 %s31, 1
        %s234 = scalar_lea.sflag [#allocation3], %s233
        %s235 = sand.u32 %s31, 1
        %s236 = smul.addr %s235, 64
        %s237 = scalar_lea.vmem [#allocation2], %s236
        // Predicated region
        $region41: #{tpu_custom_call.1} parent=39 // pred_check
          %p238 = pneg %p44
        $region42: #{tpu_custom_call.1} parent=39 // pred_check_branch
          %240 = sbr.rel (%p238) target = $region44
        $region43: #{tpu_custom_call.1} parent=39 // pred_region
          %241 = dma.done %s234, 1024
        $region44: #{tpu_custom_call.1} parent=39 // pred_fallthru
          _
        // Predicated region
        $region45: #{tpu_custom_call.1} parent=39 // pred_check
          %p242 = pneg %p65
        $region46: #{tpu_custom_call.1} parent=39 // pred_check_branch
          %244 = sbr.rel (%p242) target = $region48
        $region47: #{tpu_custom_call.1} parent=39 // pred_region
          %245 = dma.done [#allocation6], 1024
        $region48: #{tpu_custom_call.1} parent=39 // pred_fallthru
          _
        // Predicated region
        $region49: #{tpu_custom_call.1} parent=39 // pred_check
          %p246 = pneg %p107
        $region50: #{tpu_custom_call.1} parent=39 // pred_check_branch
          %248 = sbr.rel (%p246) target = $region52
        $region51: #{tpu_custom_call.1} parent=39 // pred_region
          %249 = dma.done [#allocation6], 1024
        $region52: #{tpu_custom_call.1} parent=39 // pred_fallthru
          _
        %s250 = sand.u32 %s31, 1
        %s251 = scalar_lea.sflag [#allocation3], %s250
        %s252 = sand.u32 %s31, 1
        %s253 = smul.addr %s252, 64
        %s254 = scalar_lea.vmem [#allocation2], %s253
        %p255 = pneg %p44
        %p256 = pneg %p41
        %p257 = pneg %p65
        %p258 = pneg %p62
        %p259 = pneg %p86
        %p260 = pneg %p83
        %p261 = pneg %p107
        %p262 = pneg %p104
        %p263 = pneg %p128
        %p264 = pneg %p125
        %p265 = pneg %p154
        %p266 = pneg %p151
        %s267 = sand.u32 %s141, 1
        %s268 = scalar_lea.sflag [#allocation4], %s267
        %s269 = sand.u32 %s141, 1
        %s270 = smul.addr %s269, 128
        %s271 = scalar_lea.vmem [#allocation8], %s270
        %s272 = smul.u32 16, %s23
        %s273 = smul.u32 16, %s23
        %v275 = vld [vmem:[%s237] sm:$0xf]
        %v276 = vld [vmem:[%s237 + $0x4] sm:$0xf]
        %v277 = vld [vmem:[%s237 + $0x8] sm:$0xf]
        %v278 = vld [vmem:[%s237 + $0xc] sm:$0xf]
        %v279 = vld [vmem:[%s237 + $0x10] sm:$0xf]
        %v280 = vld [vmem:[%s237 + $0x14] sm:$0xf]
        %v281 = vld [vmem:[%s237 + $0x18] sm:$0xf]
        %v282 = vld [vmem:[%s237 + $0x1c] sm:$0xf]
        %v283 = vld [vmem:[%s237 + $0x20] sm:$0xf]
        %v284 = vld [vmem:[%s237 + $0x24] sm:$0xf]
        %v285 = vld [vmem:[%s237 + $0x28] sm:$0xf]
        %v286 = vld [vmem:[%s237 + $0x2c] sm:$0xf]
        %v287 = vld [vmem:[%s237 + $0x30] sm:$0xf]
        %v288 = vld [vmem:[%s237 + $0x34] sm:$0xf]
        %v289 = vld [vmem:[%s237 + $0x38] sm:$0xf]
        %v290 = vld [vmem:[%s237 + $0x3c] sm:$0xf]
        %v291 = vld [vmem:[#allocation5] sm:$0xf]
        %v292 = vld [vmem:[#allocation5 + $0x4] sm:$0xf]
        %v293 = vld [vmem:[#allocation5 + $0x8] sm:$0xf]
        %v294 = vld [vmem:[#allocation5 + $0xc] sm:$0xf]
        %v295 = vld [vmem:[#allocation5 + $0x10] sm:$0xf]
        %v296 = vld [vmem:[#allocation5 + $0x14] sm:$0xf]
        %v297 = vld [vmem:[#allocation5 + $0x18] sm:$0xf]
        %v298 = vld [vmem:[#allocation5 + $0x1c] sm:$0xf]
        %v299 = vld [vmem:[#allocation5 + $0x20] sm:$0xf]
        %v300 = vld [vmem:[#allocation5 + $0x24] sm:$0xf]
        %v301 = vld [vmem:[#allocation5 + $0x28] sm:$0xf]
        %v302 = vld [vmem:[#allocation5 + $0x2c] sm:$0xf]
        %v303 = vld [vmem:[#allocation5 + $0x30] sm:$0xf]
        %v304 = vld [vmem:[#allocation5 + $0x34] sm:$0xf]
        %v305 = vld [vmem:[#allocation5 + $0x38] sm:$0xf]
        %v306 = vld [vmem:[#allocation5 + $0x3c] sm:$0xf]
        %v307 = vld [vmem:[%s2] sm:$0x1]
        %v309 = vlaneseq
        %v310 = vshrl.u32 %v309, 7
        %v311 = vsub.s32 0, %v310
        %v312 = vrot.slane %v307, %v311
        %v330 = vunpack.c.l.b16 %v275
        %v331 = vunpack.c.l.b16 %v276
        %v332 = vunpack.c.l.b16 %v277
        %v333 = vunpack.c.l.b16 %v278
        %v334 = vunpack.c.l.b16 %v279
        %v335 = vunpack.c.l.b16 %v280
        %v336 = vunpack.c.l.b16 %v281
        %v337 = vunpack.c.l.b16 %v282
        %v338 = vunpack.c.l.b16 %v283
        %v339 = vunpack.c.l.b16 %v284
        %v340 = vunpack.c.l.b16 %v285
        %v341 = vunpack.c.l.b16 %v286
        %v342 = vunpack.c.l.b16 %v287
        %v343 = vunpack.c.l.b16 %v288
        %v344 = vunpack.c.l.b16 %v289
        %v345 = vunpack.c.l.b16 %v290
        %v346 = vpack.c.b16 %v331, %v330
        %v347 = vpack.c.b16 %v333, %v332
        %v348 = vpack.c.b16 %v335, %v334
        %v349 = vpack.c.b16 %v337, %v336
        %v350 = vpack.c.b16 %v339, %v338
        %v351 = vpack.c.b16 %v341, %v340
        %v352 = vpack.c.b16 %v343, %v342
        %v353 = vpack.c.b16 %v345, %v344
        %v378 = vunpack.c.l.b16 %v291
        %v379 = vunpack.c.l.b16 %v292
        %v380 = vunpack.c.l.b16 %v293
        %v381 = vunpack.c.l.b16 %v294
        %v382 = vunpack.c.l.b16 %v295
        %v383 = vunpack.c.l.b16 %v296
        %v384 = vunpack.c.l.b16 %v297
        %v385 = vunpack.c.l.b16 %v298
        %v386 = vunpack.c.l.b16 %v299
        %v387 = vunpack.c.l.b16 %v300
        %v388 = vunpack.c.l.b16 %v301
        %v389 = vunpack.c.l.b16 %v302
        %v390 = vunpack.c.l.b16 %v303
        %v391 = vunpack.c.l.b16 %v304
        %v392 = vunpack.c.l.b16 %v305
        %v393 = vunpack.c.l.b16 %v306
        %v394 = vpack.c.b16 %v379, %v378
        %v395 = vpack.c.b16 %v381, %v380
        %v396 = vpack.c.b16 %v383, %v382
        %v397 = vpack.c.b16 %v385, %v384
        %v398 = vpack.c.b16 %v387, %v386
        %v399 = vpack.c.b16 %v389, %v388
        %v400 = vpack.c.b16 %v391, %v390
        %v401 = vpack.c.b16 %v393, %v392
        %410 = vmatprep.subr.bf16.mxu0 0
        %411 = vmatpush1.bf16.msra.mxu0 %v394
        %412 = vmatprep.subr.bf16.mxu0 0
        %413 = vmatpush1.bf16.msra.mxu0 %v395
        %414 = vmatprep.subr.bf16.mxu0 0
        %415 = vmatpush1.bf16.msra.mxu0 %v396
        %416 = vmatprep.subr.bf16.mxu0 0
        %417 = vmatpush1.bf16.msra.mxu0 %v397
        %418 = vmatprep.subr.bf16.mxu0 0
        %419 = vmatpush1.bf16.msra.mxu0 %v398
        %420 = vmatprep.subr.bf16.mxu0 0
        %421 = vmatpush1.bf16.msra.mxu0 %v399
        %422 = vmatprep.subr.bf16.mxu0 0
        %423 = vmatpush1.bf16.msra.mxu0 %v400
        %424 = vmatprep.subr.bf16.mxu0 0
        %425 = vmatpush1.bf16.msra.mxu0 %v401
        %426 = vmatprep.subr.bf16.mxu0 0
        %427 = vmatpush1.bf16.msra.mxu0 0
        %428 = vmatprep.subr.bf16.mxu0 0
        %429 = vmatpush1.bf16.msra.mxu0 0
        %430 = vmatprep.subr.bf16.mxu0 0
        %431 = vmatpush1.bf16.msra.mxu0 0
        %432 = vmatprep.subr.bf16.mxu0 0
        %433 = vmatpush1.bf16.msra.mxu0 0
        %434 = vmatprep.subr.bf16.mxu0 0
        %435 = vmatpush1.bf16.msra.mxu0 0
        %436 = vmatprep.subr.bf16.mxu0 0
        %437 = vmatpush1.bf16.msra.mxu0 0
        %438 = vmatprep.subr.bf16.mxu0 0
        %439 = vmatpush1.bf16.msra.mxu0 0
        %440 = vmatprep.subr.bf16.mxu0 0
        %441 = vmatpush1.bf16.msra.mxu0 0
        %442 = vmatprep.mubr.bf16.mxu0 0
        %443 = vmatmul.mubr.bf16.gmra.mrb[0].mxu0 %v346
        %v444 = vpop.f32.mrb[0].mxu0
        %v445 = vadd.f32 %v312, %v444
        %v446 = vpop.f32.mrb[0].mxu0
        %v447 = vpop.f32.mrb[0].mxu0
        %v448 = vadd.f32 %v312, %v447
        %v449 = vpop.f32.mrb[0].mxu0
        %450 = vmatprep.mubr.bf16.mxu0 0
        %451 = vmatmul.mubr.bf16.gmra.mrb[0].mxu0 %v347
        %v452 = vpop.f32.mrb[0].mxu0
        %v453 = vadd.f32 %v312, %v452
        %v454 = vpop.f32.mrb[0].mxu0
        %v455 = vpop.f32.mrb[0].mxu0
        %v456 = vadd.f32 %v312, %v455
        %v457 = vpop.f32.mrb[0].mxu0
        %458 = vmatprep.mubr.bf16.mxu0 0
        %459 = vmatmul.mubr.bf16.gmra.mrb[0].mxu0 %v348
        %v460 = vpop.f32.mrb[0].mxu0
        %v461 = vadd.f32 %v312, %v460
        %v462 = vpop.f32.mrb[0].mxu0
        %v463 = vpop.f32.mrb[0].mxu0
        %v464 = vadd.f32 %v312, %v463
        %v465 = vpop.f32.mrb[0].mxu0
        %466 = vmatprep.mubr.bf16.mxu0 0
        %467 = vmatmul.mubr.bf16.gmra.mrb[0].mxu0 %v349
        %v468 = vpop.f32.mrb[0].mxu0
        %v469 = vadd.f32 %v312, %v468
        %v470 = vpop.f32.mrb[0].mxu0
        %v471 = vpop.f32.mrb[0].mxu0
        %v472 = vadd.f32 %v312, %v471
        %v473 = vpop.f32.mrb[0].mxu0
        %474 = vmatprep.mubr.bf16.mxu0 0
        %475 = vmatmul.mubr.bf16.gmra.mrb[0].mxu0 %v350
        %v476 = vpop.f32.mrb[0].mxu0
        %v477 = vadd.f32 %v312, %v476
        %v478 = vpop.f32.mrb[0].mxu0
        %v479 = vpop.f32.mrb[0].mxu0
        %v480 = vadd.f32 %v312, %v479
        %v481 = vpop.f32.mrb[0].mxu0
        %482 = vmatprep.mubr.bf16.mxu0 0
        %483 = vmatmul.mubr.bf16.gmra.mrb[0].mxu0 %v351
        %v484 = vpop.f32.mrb[0].mxu0
        %v485 = vadd.f32 %v312, %v484
        %v486 = vpop.f32.mrb[0].mxu0
        %v487 = vpop.f32.mrb[0].mxu0
        %v488 = vadd.f32 %v312, %v487
        %v489 = vpop.f32.mrb[0].mxu0
        %490 = vmatprep.mubr.bf16.mxu0 0
        %491 = vmatmul.mubr.bf16.gmra.mrb[0].mxu0 %v352
        %v492 = vpop.f32.mrb[0].mxu0
        %v493 = vadd.f32 %v312, %v492
        %v494 = vpop.f32.mrb[0].mxu0
        %v495 = vpop.f32.mrb[0].mxu0
        %v496 = vadd.f32 %v312, %v495
        %v497 = vpop.f32.mrb[0].mxu0
        %498 = vmatprep.mubr.bf16.mxu0 0
        %499 = vmatmul.mubr.bf16.gmra.mrb[0].mxu0 %v353
        %v500 = vpop.f32.mrb[0].mxu0
        %v501 = vadd.f32 %v312, %v500
        %v502 = vpop.f32.mrb[0].mxu0
        %v503 = vpop.f32.mrb[0].mxu0
        %v504 = vadd.f32 %v312, %v503
        %v505 = vpop.f32.mrb[0].mxu0
        %506 = vdwg.mxu0
        %vm507 = vcmp.ge.f32.partialorder %v445, 0.0
        %vm508 = vcmp.ge.f32.partialorder %v448, 0.0
        %vm509 = vcmp.ge.f32.partialorder %v453, 0.0
        %vm510 = vcmp.ge.f32.partialorder %v456, 0.0
        %vm511 = vcmp.ge.f32.partialorder %v461, 0.0
        %vm512 = vcmp.ge.f32.partialorder %v464, 0.0
        %vm513 = vcmp.ge.f32.partialorder %v469, 0.0
        %vm514 = vcmp.ge.f32.partialorder %v472, 0.0
        %vm515 = vcmp.ge.f32.partialorder %v477, 0.0
        %vm516 = vcmp.ge.f32.partialorder %v480, 0.0
        %vm517 = vcmp.ge.f32.partialorder %v485, 0.0
        %vm518 = vcmp.ge.f32.partialorder %v488, 0.0
        %vm519 = vcmp.ge.f32.partialorder %v493, 0.0
        %vm520 = vcmp.ge.f32.partialorder %v496, 0.0
        %vm521 = vcmp.ge.f32.partialorder %v501, 0.0
        %vm522 = vcmp.ge.f32.partialorder %v504, 0.0
        %v523 = vmul.f32 %v445, 0.01
        %v524 = vmul.f32 %v448, 0.01
        %v525 = vmul.f32 %v453, 0.01
        %v526 = vmul.f32 %v456, 0.01
        %v527 = vmul.f32 %v461, 0.01
        %v528 = vmul.f32 %v464, 0.01
        %v529 = vmul.f32 %v469, 0.01
        %v530 = vmul.f32 %v472, 0.01
        %v531 = vmul.f32 %v477, 0.01
        %v532 = vmul.f32 %v480, 0.01
        %v533 = vmul.f32 %v485, 0.01
        %v534 = vmul.f32 %v488, 0.01
        %v535 = vmul.f32 %v493, 0.01
        %v536 = vmul.f32 %v496, 0.01
        %v537 = vmul.f32 %v501, 0.01
        %v538 = vmul.f32 %v504, 0.01
        %v539 = vsel %vm507, %v445, %v523
        %v540 = vsel %vm508, %v448, %v524
        %v541 = vsel %vm509, %v453, %v525
        %v542 = vsel %vm510, %v456, %v526
        %v543 = vsel %vm511, %v461, %v527
        %v544 = vsel %vm512, %v464, %v528
        %v545 = vsel %vm513, %v469, %v529
        %v546 = vsel %vm514, %v472, %v530
        %v547 = vsel %vm515, %v477, %v531
        %v548 = vsel %vm516, %v480, %v532
        %v549 = vsel %vm517, %v485, %v533
        %v550 = vsel %vm518, %v488, %v534
        %v551 = vsel %vm519, %v493, %v535
        %v552 = vsel %vm520, %v496, %v536
        %v553 = vsel %vm521, %v501, %v537
        %v554 = vsel %vm522, %v504, %v538
        %v555 = vpack.c.bf16 %v540, %v539
        %v556 = vpack.c.bf16 %v542, %v541
        %v557 = vpack.c.bf16 %v544, %v543
        %v558 = vpack.c.bf16 %v546, %v545
        %v559 = vpack.c.bf16 %v548, %v547
        %v560 = vpack.c.bf16 %v550, %v549
        %v561 = vpack.c.bf16 %v552, %v551
        %v562 = vpack.c.bf16 %v554, %v553
        %v563 = vld [vmem:[#allocation7] sm:$0xf]
        %v564 = vld [vmem:[#allocation7 + $0x4] sm:$0xf]
        %v565 = vld [vmem:[#allocation7 + $0x8] sm:$0xf]
        %v566 = vld [vmem:[#allocation7 + $0xc] sm:$0xf]
        %v567 = vld [vmem:[#allocation7 + $0x10] sm:$0xf]
        %v568 = vld [vmem:[#allocation7 + $0x14] sm:$0xf]
        %v569 = vld [vmem:[#allocation7 + $0x18] sm:$0xf]
        %v570 = vld [vmem:[#allocation7 + $0x1c] sm:$0xf]
        %v571 = vld [vmem:[#allocation7 + $0x20] sm:$0xf]
        %v572 = vld [vmem:[#allocation7 + $0x24] sm:$0xf]
        %v573 = vld [vmem:[#allocation7 + $0x28] sm:$0xf]
        %v574 = vld [vmem:[#allocation7 + $0x2c] sm:$0xf]
        %v575 = vld [vmem:[#allocation7 + $0x30] sm:$0xf]
        %v576 = vld [vmem:[#allocation7 + $0x34] sm:$0xf]
        %v577 = vld [vmem:[#allocation7 + $0x38] sm:$0xf]
        %v578 = vld [vmem:[#allocation7 + $0x3c] sm:$0xf]
        %v579 = vld [vmem:[%s4] sm:$0x1]
        %v581 = vlaneseq
        %v582 = vshrl.u32 %v581, 7
        %v583 = vsub.s32 0, %v582
        %v584 = vrot.slane %v579, %v583
        %v602 = vunpack.c.l.b16 %v563
        %v603 = vunpack.c.l.b16 %v564
        %v604 = vunpack.c.l.b16 %v565
        %v605 = vunpack.c.l.b16 %v566
        %v606 = vunpack.c.l.b16 %v567
        %v607 = vunpack.c.l.b16 %v568
        %v608 = vunpack.c.l.b16 %v569
        %v609 = vunpack.c.l.b16 %v570
        %v610 = vunpack.c.l.b16 %v571
        %v611 = vunpack.c.l.b16 %v572
        %v612 = vunpack.c.l.b16 %v573
        %v613 = vunpack.c.l.b16 %v574
        %v614 = vunpack.c.l.b16 %v575
        %v615 = vunpack.c.l.b16 %v576
        %v616 = vunpack.c.l.b16 %v577
        %v617 = vunpack.c.l.b16 %v578
        %v618 = vpack.c.b16 %v603, %v602
        %v619 = vpack.c.b16 %v605, %v604
        %v620 = vpack.c.b16 %v607, %v606
        %v621 = vpack.c.b16 %v609, %v608
        %v622 = vpack.c.b16 %v611, %v610
        %v623 = vpack.c.b16 %v613, %v612
        %v624 = vpack.c.b16 %v615, %v614
        %v625 = vpack.c.b16 %v617, %v616
        %634 = vmatprep.subr.bf16.mxu0 0
        %635 = vmatpush1.bf16.msra.mxu0 %v618
        %636 = vmatprep.subr.bf16.mxu0 0
        %637 = vmatpush1.bf16.msra.mxu0 %v619
        %638 = vmatprep.subr.bf16.mxu0 0
        %639 = vmatpush1.bf16.msra.mxu0 %v620
        %640 = vmatprep.subr.bf16.mxu0 0
        %641 = vmatpush1.bf16.msra.mxu0 %v621
        %642 = vmatprep.subr.bf16.mxu0 0
        %643 = vmatpush1.bf16.msra.mxu0 %v622
        %644 = vmatprep.subr.bf16.mxu0 0
        %645 = vmatpush1.bf16.msra.mxu0 %v623
        %646 = vmatprep.subr.bf16.mxu0 0
        %647 = vmatpush1.bf16.msra.mxu0 %v624
        %648 = vmatprep.subr.bf16.mxu0 0
        %649 = vmatpush1.bf16.msra.mxu0 %v625
        %650 = vmatprep.subr.bf16.mxu0 0
        %651 = vmatpush1.bf16.msra.mxu0 0
        %652 = vmatprep.subr.bf16.mxu0 0
        %653 = vmatpush1.bf16.msra.mxu0 0
        %654 = vmatprep.subr.bf16.mxu0 0
        %655 = vmatpush1.bf16.msra.mxu0 0
        %656 = vmatprep.subr.bf16.mxu0 0
        %657 = vmatpush1.bf16.msra.mxu0 0
        %658 = vmatprep.subr.bf16.mxu0 0
        %659 = vmatpush1.bf16.msra.mxu0 0
        %660 = vmatprep.subr.bf16.mxu0 0
        %661 = vmatpush1.bf16.msra.mxu0 0
        %662 = vmatprep.subr.bf16.mxu0 0
        %663 = vmatpush1.bf16.msra.mxu0 0
        %664 = vmatprep.subr.bf16.mxu0 0
        %665 = vmatpush1.bf16.msra.mxu0 0
        %666 = vmatprep.mubr.bf16.mxu0 0
        %667 = vmatmul.mubr.bf16.gmra.mrb[0].mxu0 %v555
        %v668 = vpop.f32.mrb[0].mxu0
        %v669 = vadd.f32 %v584, %v668
        %v670 = vpop.f32.mrb[0].mxu0
        %v671 = vpop.f32.mrb[0].mxu0
        %v672 = vadd.f32 %v584, %v671
        %v673 = vpop.f32.mrb[0].mxu0
        %674 = vmatprep.mubr.bf16.mxu0 0
        %675 = vmatmul.mubr.bf16.gmra.mrb[0].mxu0 %v556
        %v676 = vpop.f32.mrb[0].mxu0
        %v677 = vadd.f32 %v584, %v676
        %v678 = vpop.f32.mrb[0].mxu0
        %v679 = vpop.f32.mrb[0].mxu0
        %v680 = vadd.f32 %v584, %v679
        %v681 = vpop.f32.mrb[0].mxu0
        %682 = vmatprep.mubr.bf16.mxu0 0
        %683 = vmatmul.mubr.bf16.gmra.mrb[0].mxu0 %v557
        %v684 = vpop.f32.mrb[0].mxu0
        %v685 = vadd.f32 %v584, %v684
        %v686 = vpop.f32.mrb[0].mxu0
        %v687 = vpop.f32.mrb[0].mxu0
        %v688 = vadd.f32 %v584, %v687
        %v689 = vpop.f32.mrb[0].mxu0
        %690 = vmatprep.mubr.bf16.mxu0 0
        %691 = vmatmul.mubr.bf16.gmra.mrb[0].mxu0 %v558
        %v692 = vpop.f32.mrb[0].mxu0
        %v693 = vadd.f32 %v584, %v692
        %v694 = vpop.f32.mrb[0].mxu0
        %v695 = vpop.f32.mrb[0].mxu0
        %v696 = vadd.f32 %v584, %v695
        %v697 = vpop.f32.mrb[0].mxu0
        %698 = vmatprep.mubr.bf16.mxu0 0
        %699 = vmatmul.mubr.bf16.gmra.mrb[0].mxu0 %v559
        %v700 = vpop.f32.mrb[0].mxu0
        %v701 = vadd.f32 %v584, %v700
        %v702 = vpop.f32.mrb[0].mxu0
        %v703 = vpop.f32.mrb[0].mxu0
        %v704 = vadd.f32 %v584, %v703
        %v705 = vpop.f32.mrb[0].mxu0
        %706 = vmatprep.mubr.bf16.mxu0 0
        %707 = vmatmul.mubr.bf16.gmra.mrb[0].mxu0 %v560
        %v708 = vpop.f32.mrb[0].mxu0
        %v709 = vadd.f32 %v584, %v708
        %v710 = vpop.f32.mrb[0].mxu0
        %v711 = vpop.f32.mrb[0].mxu0
        %v712 = vadd.f32 %v584, %v711
        %v713 = vpop.f32.mrb[0].mxu0
        %714 = vmatprep.mubr.bf16.mxu0 0
        %715 = vmatmul.mubr.bf16.gmra.mrb[0].mxu0 %v561
        %v716 = vpop.f32.mrb[0].mxu0
        %v717 = vadd.f32 %v584, %v716
        %v718 = vpop.f32.mrb[0].mxu0
        %v719 = vpop.f32.mrb[0].mxu0
        %v720 = vadd.f32 %v584, %v719
        %v721 = vpop.f32.mrb[0].mxu0
        %722 = vmatprep.mubr.bf16.mxu0 0
        %723 = vmatmul.mubr.bf16.gmra.mrb[0].mxu0 %v562
        %v724 = vpop.f32.mrb[0].mxu0
        %v725 = vadd.f32 %v584, %v724
        %v726 = vpop.f32.mrb[0].mxu0
        %v727 = vpop.f32.mrb[0].mxu0
        %v728 = vadd.f32 %v584, %v727
        %v729 = vpop.f32.mrb[0].mxu0
        %730 = vdwg.mxu0
        %vm731 = vcmp.ge.f32.partialorder %v669, 0.0
        %vm732 = vcmp.ge.f32.partialorder %v672, 0.0
        %vm733 = vcmp.ge.f32.partialorder %v677, 0.0
        %vm734 = vcmp.ge.f32.partialorder %v680, 0.0
        %vm735 = vcmp.ge.f32.partialorder %v685, 0.0
        %vm736 = vcmp.ge.f32.partialorder %v688, 0.0
        %vm737 = vcmp.ge.f32.partialorder %v693, 0.0
        %vm738 = vcmp.ge.f32.partialorder %v696, 0.0
        %vm739 = vcmp.ge.f32.partialorder %v701, 0.0
        %vm740 = vcmp.ge.f32.partialorder %v704, 0.0
        %vm741 = vcmp.ge.f32.partialorder %v709, 0.0
        %vm742 = vcmp.ge.f32.partialorder %v712, 0.0
        %vm743 = vcmp.ge.f32.partialorder %v717, 0.0
        %vm744 = vcmp.ge.f32.partialorder %v720, 0.0
        %vm745 = vcmp.ge.f32.partialorder %v725, 0.0
        %vm746 = vcmp.ge.f32.partialorder %v728, 0.0
        %v747 = vmul.f32 %v669, 0.01
        %v748 = vmul.f32 %v672, 0.01
        %v749 = vmul.f32 %v677, 0.01
        %v750 = vmul.f32 %v680, 0.01
        %v751 = vmul.f32 %v685, 0.01
        %v752 = vmul.f32 %v688, 0.01
        %v753 = vmul.f32 %v693, 0.01
        %v754 = vmul.f32 %v696, 0.01
        %v755 = vmul.f32 %v701, 0.01
        %v756 = vmul.f32 %v704, 0.01
        %v757 = vmul.f32 %v709, 0.01
        %v758 = vmul.f32 %v712, 0.01
        %v759 = vmul.f32 %v717, 0.01
        %v760 = vmul.f32 %v720, 0.01
        %v761 = vmul.f32 %v725, 0.01
        %v762 = vmul.f32 %v728, 0.01
        %v763 = vsel %vm731, %v669, %v747
        %v764 = vsel %vm732, %v672, %v748
        %v765 = vsel %vm733, %v677, %v749
        %v766 = vsel %vm734, %v680, %v750
        %v767 = vsel %vm735, %v685, %v751
        %v768 = vsel %vm736, %v688, %v752
        %v769 = vsel %vm737, %v693, %v753
        %v770 = vsel %vm738, %v696, %v754
        %v771 = vsel %vm739, %v701, %v755
        %v772 = vsel %vm740, %v704, %v756
        %v773 = vsel %vm741, %v709, %v757
        %v774 = vsel %vm742, %v712, %v758
        %v775 = vsel %vm743, %v717, %v759
        %v776 = vsel %vm744, %v720, %v760
        %v777 = vsel %vm745, %v725, %v761
        %v778 = vsel %vm746, %v728, %v762
        %779 = vst [vmem:[%s271] sm:$0xff] %v763
        %780 = vst [vmem:[%s271 + $0x8] sm:$0xff] %v764
        %781 = vst [vmem:[%s271 + $0x10] sm:$0xff] %v765
        %782 = vst [vmem:[%s271 + $0x18] sm:$0xff] %v766
        %783 = vst [vmem:[%s271 + $0x20] sm:$0xff] %v767
        %784 = vst [vmem:[%s271 + $0x28] sm:$0xff] %v768
        %785 = vst [vmem:[%s271 + $0x30] sm:$0xff] %v769
        %786 = vst [vmem:[%s271 + $0x38] sm:$0xff] %v770
        %787 = vst [vmem:[%s271 + $0x40] sm:$0xff] %v771
        %788 = vst [vmem:[%s271 + $0x48] sm:$0xff] %v772
        %789 = vst [vmem:[%s271 + $0x50] sm:$0xff] %v773
        %790 = vst [vmem:[%s271 + $0x58] sm:$0xff] %v774
        %791 = vst [vmem:[%s271 + $0x60] sm:$0xff] %v775
        %792 = vst [vmem:[%s271 + $0x68] sm:$0xff] %v776
        %793 = vst [vmem:[%s271 + $0x70] sm:$0xff] %v777
        %794 = vst [vmem:[%s271 + $0x78] sm:$0xff] %v778
        %s795 = sand.u32 %s141, 1
        %s796 = scalar_lea.sflag [#allocation4], %s795
        %s797 = sand.u32 %s141, 1
        %s798 = smul.addr %s797, 128
        %s799 = scalar_lea.vmem [#allocation8], %s798
        // Predicated region
        $region53: #{tpu_custom_call.1} parent=39 // pred_check
          %p800 = pneg %p151
        $region54: #{tpu_custom_call.1} parent=39 // pred_check_branch
          %802 = sbr.rel (%p800) target = $region56
        $region55: #{tpu_custom_call.1} parent=39 // pred_region
          %s803 = smul.u32 16, %s23
          %s805 = ssub.s32 2048, 2048
          %806 = vsyncadd %s796, %s805
          %s807 = smul.addr %s803, 128
          %s808 = scalar_lea.hbm %s5, %s807
          %s809 = sshll.u32 %s799, 4
          %s810 = int_to_ptr.vmem [resolvable:$true] %s809
          %815 = dma.vmem_to_hbm [thread:$0]  %s810, 2048, %s808, %s796, 128, 128, 8
        $region56: #{tpu_custom_call.1} parent=39 // pred_fallthru
          _
      $region40: #{tpu_custom_call.1} parent=5 // pred_fallthru
        _
      %p816 = scmp.le.s32.totalorder 2, %s18
      // Predicated region
      $region57: #{tpu_custom_call.1} parent=5 // pred_check
        %p817 = pneg %p816
      $region58: #{tpu_custom_call.1} parent=5 // pred_check_branch
        %819 = sbr.rel (%p817) target = $region60
      $region59: #{tpu_custom_call.1} parent=5 // pred_region
        %s820 = ssub.s32 %s18, 2
        // Predicated region
        $region61: #{tpu_custom_call.1} parent=59 // pred_check
          %p821 = pneg %p157
        $region62: #{tpu_custom_call.1} parent=59 // pred_check_branch
          %823 = sbr.rel (%p821) target = $region64
        $region63: #{tpu_custom_call.1} parent=59 // pred_region
          %s824 = sand.u32 %s142, 1
          %s825 = scalar_lea.sflag [#allocation4], %s824
          %s826 = sand.u32 %s142, 1
          %s827 = smul.addr %s826, 128
          %s828 = scalar_lea.vmem [#allocation8], %s827
          %829 = dma.done %s825, 2048
        $region64: #{tpu_custom_call.1} parent=59 // pred_fallthru
          _
      $region60: #{tpu_custom_call.1} parent=5 // pred_fallthru
        _
    $region6: #{tpu_custom_call.1} parent=1 // loop_footer
      %s22 = sadd.s32 1, %s18
    $region7: #{tpu_custom_call.1} parent=1 // loop_footer_branch
      %17 = sbr.rel target = $region3
    $region8: #{tpu_custom_call.1} parent=1 // loop_exit
      _
    %830 = vsyncpa [#allocation3], 1
    %s831 = scalar_lea.sflag [#allocation3], 1
    %832 = vsyncpa %s831, 1
    %833 = vsyncpa [#allocation6], 1
    %834 = vsyncpa [#allocation4], 1
    %s835 = scalar_lea.sflag [#allocation4], 1
    %836 = vsyncpa %s835, 1

</llo_original>
